<compile_context>
chip_gen: v7x
topology: tpu7x:2x2x1
jax: 0.10.0
libtpu: 0.0.40
codegen_flags: <defaults>
</compile_context>

<pallas_src>
import jax
import jax.numpy as jnp
from jax.experimental import pallas as pl
from jax.experimental.pallas import tpu as pltpu


_LANE = 1024            # lane-dense last dim (multiple of 128)
_MAX_TILE_ROWS = 1024   # 1024 * 1024 * 4 B = 4 MiB per block per array
                        # -> 3 arrays * 2 buffers * 4 MiB = 24 MiB pipelined


def _poly3_kernel(p_ref, x1_ref, x2_ref, o_ref):
    # p_ref lives in SMEM: p_ref[0] = p1 (additive), p_ref[1] = p2 (scale)
    p1 = p_ref[0]
    p2 = p_ref[1]
    o_ref[...] = p1 + p2 * x1_ref[...] * x2_ref[...]


def polynomial3(params, x1, x2):
    """params: (2,) float32 array [p1, p2]; x1, x2: arbitrary same-shape f32."""
    assert x1.shape == x2.shape and x1.dtype == x2.dtype
    orig_shape = x1.shape
    total = x1.size

    # Flatten to a lane-dense 2-D slab (rows, _LANE); pad the tail if needed.
    rows = pl.cdiv(total, _LANE)
    padded = rows * _LANE
    x1f = jnp.ravel(x1)
    x2f = jnp.ravel(x2)
    if padded != total:
        pad = padded - total
        x1f = jnp.pad(x1f, (0, pad))
        x2f = jnp.pad(x2f, (0, pad))
    x1f = x1f.reshape(rows, _LANE)
    x2f = x2f.reshape(rows, _LANE)

    # tile_rows is either a multiple of 8 (1024) or equals the full rows dim,
    # so the (8,128) block constraint is always satisfied.
    tile_rows = min(_MAX_TILE_ROWS, rows)
    grid = (pl.cdiv(rows, tile_rows),)

    # Scoped-VMEM budget: 3 arrays x 2 pipeline buffers x tile bytes + margin,
    # floored at 32 MiB and capped at 48 MiB (safe for v7x's 64 MiB VMEM).
    tile_bytes = tile_rows * _LANE * x1.dtype.itemsize
    vmem_limit = max(min(6 * tile_bytes + (4 << 20), 48 << 20), 32 << 20)

    out = pl.pallas_call(
        _poly3_kernel,
        out_shape=jax.ShapeDtypeStruct((rows, _LANE), x1.dtype),
        grid_spec=pltpu.PrefetchScalarGridSpec(
            num_scalar_prefetch=0,
            grid=grid,
            in_specs=[
                pl.BlockSpec(memory_space=pltpu.SMEM),                 # params
                pl.BlockSpec((tile_rows, _LANE), lambda i: (i, 0)),    # x1 tile
                pl.BlockSpec((tile_rows, _LANE), lambda i: (i, 0)),    # x2 tile
            ],
            out_specs=pl.BlockSpec((tile_rows, _LANE), lambda i: (i, 0)),
        ),
        compiler_params=pltpu.CompilerParams(
            dimension_semantics=("parallel",),   # shards rows over v7x's 2 TCs
            vmem_limit_bytes=vmem_limit,
        ),
    )(params, x1f, x2f)

    # Undo padding / flattening.
    return out.reshape(-1)[:total].reshape(orig_shape)


if __name__ == "__main__":
    key = jax.random.PRNGKey(0)
    k_p, k_x1, k_x2 = jax.random.split(key, 3)

    # Deterministic "parameter" init mirroring torch.randn(()) for self.x1, self.x2
    params = jax.random.normal(k_p, (2,), dtype=jnp.float32)

    # Small input tensors (elementwise op)
    B, N = 8, 128
    x1 = jax.random.normal(k_x1, (B, N), dtype=jnp.float32)
    x2 = jax.random.normal(k_x2, (B, N), dtype=jnp.float32)

    out = polynomial3(params, x1, x2)
    out = jax.block_until_ready(out)

    # Reference check against plain JAX
    ref = params[0] + params[1] * x1 * x2
    assert jnp.allclose(out, ref, atol=1e-6, rtol=1e-6), "mismatch vs reference"

    print("KERNEL_OK")
</pallas_src>

<mosaic_0001>
module attributes {stable_mosaic.version = 11 : i64} {
  func.func @_poly3_kernel(%arg0: i32, %arg1: memref<2xf32, #tpu.memory_space<smem>>, %arg2: memref<1x1024xf32, #tpu.memory_space<vmem>>, %arg3: memref<1x1024xf32, #tpu.memory_space<vmem>>, %arg4: memref<1x1024xf32, #tpu.memory_space<vmem>>) attributes {dimension_semantics = [#tpu.dimension_semantics<parallel>], iteration_bounds = array<i64: 1>, scalar_prefetch = 0 : i64, scratch_operands = 0 : i64, tpu.core_type = #tpu.core_type<tc>, window_params = [{transform_indices = @transform_0, window_bounds = array<i64: 2>}, {transform_indices = @transform_1, window_bounds = array<i64: 1, 1024>}, {transform_indices = @transform_2, window_bounds = array<i64: 1, 1024>}, {transform_indices = @transform_3, window_bounds = array<i64: 1, 1024>}]} {
    %c0 = arith.constant 0 : index
    %0 = memref.load %arg1[%c0] : memref<2xf32, #tpu.memory_space<smem>>
    %c1 = arith.constant 1 : index
    %1 = memref.load %arg1[%c1] : memref<2xf32, #tpu.memory_space<smem>>
    %c0_0 = arith.constant 0 : index
    %c0_1 = arith.constant 0 : index
    %2 = vector.load %arg2[%c0_0, %c0_1] : memref<1x1024xf32, #tpu.memory_space<vmem>>, vector<1x1024xf32>
    %3 = vector.broadcast %1 : f32 to vector<1x1024xf32>
    %4 = arith.mulf %3, %2 : vector<1x1024xf32>
    %c0_2 = arith.constant 0 : index
    %c0_3 = arith.constant 0 : index
    %5 = vector.load %arg3[%c0_2, %c0_3] : memref<1x1024xf32, #tpu.memory_space<vmem>>, vector<1x1024xf32>
    %6 = arith.mulf %4, %5 : vector<1x1024xf32>
    %7 = vector.broadcast %0 : f32 to vector<1x1024xf32>
    %8 = arith.addf %7, %6 : vector<1x1024xf32>
    %c0_4 = arith.constant 0 : index
    %c0_5 = arith.constant 0 : index
    %9 = vector.load %arg4[%c0_4, %c0_5] : memref<1x1024xf32, #tpu.memory_space<vmem>>, vector<1x1024xf32>
    tpu.vector_store %arg4[%c0_4, %c0_5], %8 {strides = array<i32>} : memref<1x1024xf32, #tpu.memory_space<vmem>>, vector<1x1024xf32>,
    return
  }
  func.func @transform_0(%arg0: i32) -> i32 {
    %c0_i32 = arith.constant 0 : i32
    %c0_i32_0 = arith.constant 0 : i32
    return %c0_i32 : i32
  }
  func.func @transform_1(%arg0: i32) -> (i32, i32) {
    %c0_i32 = arith.constant 0 : i32
    %c0_i32_0 = arith.constant 0 : i32
    return %arg0, %c0_i32 : i32, i32
  }
  func.func @transform_2(%arg0: i32) -> (i32, i32) {
    %c0_i32 = arith.constant 0 : i32
    %c0_i32_0 = arith.constant 0 : i32
    return %arg0, %c0_i32 : i32, i32
  }
  func.func @transform_3(%arg0: i32) -> (i32, i32) {
    %c0_i32 = arith.constant 0 : i32
    %c0_i32_0 = arith.constant 0 : i32
    return %arg0, %c0_i32 : i32, i32
  }
}

</mosaic_0001>

<llo_original>
// kernel: tpu_custom_call.1
$region0: #{tpu_custom_call.1}
  #allocation0 [shape = 'u32[]', space=smem, size = 0x4, offset = 0x4, fixed_abs, tag = 'smem constant byte address 0x4 - core index']
  #allocation1 [shape = 'u32[144,128]{1,0:T(1,128)}', space=vmem, size = 0x12000, scoped, tag = 'internal scratch']
  %s0 = inlined_call_operand.hbm [shape: f32[2], index: 0, kind: input, shape index: {}]
  %s1 = inlined_call_operand.hbm [shape: f32[1,1024], index: 1, kind: input, shape index: {}]
  %s2 = inlined_call_operand.hbm [shape: f32[1,1024], index: 2, kind: input, shape index: {}]
  %s3 = inlined_call_operand.hbm [shape: f32[1,1024], index: 3, kind: output, shape index: {}]
  %s4 = sld [smem:[#allocation0]]
  $region34: #{tpu_custom_call.1} parent=0
    _
  %s6 = ssub.s32 1, %s4
  %s7 = scalar_select 0, %s6, %s4
  $region1: #{tpu_custom_call.1} parent=0
    #allocation2 [shape = 'u8[512]{0}', space=smem, size = 0x200, scoped, tag = 'input window, operand 0, single buffered']
    #allocation3 [shape = 's32[1]{0}', space=sflag, size = 0x4, scoped, tag = 'scoped memory for tpu_custom_call.1']
    #allocation4 [shape = 's32[1]{0}', space=sflag, size = 0x4, scoped, tag = 'scoped memory for tpu_custom_call.1']
    #allocation5 [shape = 's32[1]{0}', space=sflag, size = 0x4, scoped, tag = 'scoped memory for tpu_custom_call.1']
    #allocation6 [shape = 'u8[4096]{0}', space=vmem, size = 0x1000, scoped, tag = 'input window, operand 1, single buffered']
    #allocation7 [shape = 'u8[4096]{0}', space=vmem, size = 0x1000, scoped, tag = 'input window, operand 2, single buffered']
    #allocation8 [shape = 's32[1]{0}', space=sflag, size = 0x4, scoped, tag = 'scoped memory for tpu_custom_call.1']
    #allocation9 [shape = 'u8[4096]{0}', space=vmem, size = 0x1000, scoped, tag = 'output window, operand 0, single buffered']
    %8 = vsyncpa [#allocation5], 0
    %9 = vsyncpa [#allocation3], 0
    %10 = vsyncpa [#allocation8], 0
    %11 = vsyncpa [#allocation4], 0
    // Predicated region
    $region2: #{tpu_custom_call.1} parent=1 // pred_check
      _
    $region3: #{tpu_custom_call.1} parent=1 // pred_check_branch
      %13 = sbr.rel (0) target = $region5
    $region4: #{tpu_custom_call.1} parent=1 // pred_region
      %s15 = ssub.s32 16, 16
      %16 = vsyncadd [#allocation5], %s15
      %19 = dma.hbm_to_smem %s0, 16, [#allocation2], [#allocation5]
    $region5: #{tpu_custom_call.1} parent=1 // pred_fallthru
      _
    // Predicated region
    $region6: #{tpu_custom_call.1} parent=1 // pred_check
      _
    $region7: #{tpu_custom_call.1} parent=1 // pred_check_branch
      %21 = sbr.rel (0) target = $region9
    $region8: #{tpu_custom_call.1} parent=1 // pred_region
      %s23 = ssub.s32 128, 128
      %24 = vsyncadd [#allocation3], %s23
      %s26 = sshll.u32 [#allocation6], 4
      %s27 = int_to_ptr.vmem [resolvable:$true] %s26
      %29 = dma.hbm_to_vmem [thread:$0]  %s1, 128, %s27, [#allocation3]
    $region9: #{tpu_custom_call.1} parent=1 // pred_fallthru
      _
    // Predicated region
    $region10: #{tpu_custom_call.1} parent=1 // pred_check
      _
    $region11: #{tpu_custom_call.1} parent=1 // pred_check_branch
      %31 = sbr.rel (0) target = $region13
    $region12: #{tpu_custom_call.1} parent=1 // pred_region
      %s33 = ssub.s32 128, 128
      %34 = vsyncadd [#allocation8], %s33
      %s36 = sshll.u32 [#allocation7], 4
      %s37 = int_to_ptr.vmem [resolvable:$true] %s36
      %39 = dma.hbm_to_vmem [thread:$0]  %s2, 128, %s37, [#allocation8]
    $region13: #{tpu_custom_call.1} parent=1 // pred_fallthru
      _
    // Predicated region
    $region14: #{tpu_custom_call.1} parent=1 // pred_check
      _
    $region15: #{tpu_custom_call.1} parent=1 // pred_check_branch
      %41 = sbr.rel (0) target = $region17
    $region16: #{tpu_custom_call.1} parent=1 // pred_region
      %42 = dma.done [#allocation5], 16
    $region17: #{tpu_custom_call.1} parent=1 // pred_fallthru
      _
    // Predicated region
    $region18: #{tpu_custom_call.1} parent=1 // pred_check
      _
    $region19: #{tpu_custom_call.1} parent=1 // pred_check_branch
      %44 = sbr.rel (0) target = $region21
    $region20: #{tpu_custom_call.1} parent=1 // pred_region
      %45 = dma.done [#allocation3], 128
    $region21: #{tpu_custom_call.1} parent=1 // pred_fallthru
      _
    // Predicated region
    $region22: #{tpu_custom_call.1} parent=1 // pred_check
      _
    $region23: #{tpu_custom_call.1} parent=1 // pred_check_branch
      %47 = sbr.rel (0) target = $region25
    $region24: #{tpu_custom_call.1} parent=1 // pred_region
      %48 = dma.done [#allocation8], 128
    $region25: #{tpu_custom_call.1} parent=1 // pred_fallthru
      _
    %49 = sfence
    %s50 = sld [smem:[#allocation2]]
    %s51 = sld [smem:[#allocation2 + $0x1]]
    %v52 = vld [vmem:[#allocation6] sm:$0xff]
    %v53 = vstv %s51
    %v54 = vmul.f32 %v53, %v52
    %v55 = vld [vmem:[#allocation7] sm:$0xff]
    %v56 = vmul.f32 %v54, %v55
    %v57 = vstv %s50
    %v58 = vadd.f32 %v57, %v56
    %59 = vst [vmem:[#allocation9] sm:$0xff] %v58
    // Predicated region
    $region26: #{tpu_custom_call.1} parent=1 // pred_check
      _
    $region27: #{tpu_custom_call.1} parent=1 // pred_check_branch
      %61 = sbr.rel (0) target = $region29
    $region28: #{tpu_custom_call.1} parent=1 // pred_region
      %s63 = ssub.s32 128, 128
      %64 = vsyncadd [#allocation4], %s63
      %s66 = sshll.u32 [#allocation9], 4
      %s67 = int_to_ptr.vmem [resolvable:$true] %s66
      %69 = dma.vmem_to_hbm [thread:$0]  %s67, 128, %s3, [#allocation4]
    $region29: #{tpu_custom_call.1} parent=1 // pred_fallthru
      _
    // Predicated region
    $region30: #{tpu_custom_call.1} parent=1 // pred_check
      _
    $region31: #{tpu_custom_call.1} parent=1 // pred_check_branch
      %71 = sbr.rel (0) target = $region33
    $region32: #{tpu_custom_call.1} parent=1 // pred_region
      %72 = dma.done [#allocation4], 128
    $region33: #{tpu_custom_call.1} parent=1 // pred_fallthru
      _
    %73 = vsyncpa [#allocation3], 1
    %74 = vsyncpa [#allocation8], 1
    %75 = vsyncpa [#allocation4], 1
    %76 = vsyncpa [#allocation5], 1

</llo_original>
